<compile_context>
chip_gen: v7x
topology: tpu7x:2x2x1
jax: 0.10.0
libtpu: 0.0.40
codegen_flags: <defaults>
</compile_context>

<pallas_src>
import functools

import jax
import jax.numpy as jnp
from jax import lax
from jax.experimental import pallas as pl
from jax.experimental.pallas import tpu as pltpu


def _embed_head_kernel(x_ref, w1t_ref, shift_ref, w2t_ref, b2_ref, o_ref):
    # x_ref:    (Cin, TP)  bf16   -- pixels on lanes, channels on sublanes
    # w1t_ref:  (Cin, Cin) bf16   -- BN-folded conv1 weight, transposed
    # shift_ref:(Cin, 1)   f32    -- BN-folded conv1 bias
    # w2t_ref:  (Cout, Cin) bf16  -- conv2 weight, transposed
    # b2_ref:   (Cout, 1)  f32
    # o_ref:    (Cout, TP) f32
    x = x_ref[...]

    # Conv1x1 #1 (BN + bias folded) + ReLU.  f32 accumulation on the MXU.
    h = jnp.dot(w1t_ref[...], x, preferred_element_type=jnp.float32)
    h = jnp.maximum(h + shift_ref[...], 0.0)

    # Conv1x1 #2 + bias.
    y = jnp.dot(w2t_ref[...], h.astype(jnp.bfloat16),
                preferred_element_type=jnp.float32)
    y = y + b2_ref[...]

    # L2 normalize over the channel (sublane) axis:
    #   F.normalize: y / max(||y||_2, 1e-12)  ==  y * rsqrt(max(sum(y^2), 1e-24))
    ssq = jnp.sum(y * y, axis=0, keepdims=True)       # (1, TP) XLU reduce
    inv = lax.rsqrt(jnp.maximum(ssq, 1e-24))          # EUP, no VPU divide
    o_ref[...] = (y * inv).astype(o_ref.dtype)


@functools.partial(jax.jit, static_argnames=("tile_p",))
def embedding_head_forward(x_nchw, params, tile_p=512):
    """x_nchw: (N, Cin, H, W) float32. Returns (N, Cout, H, W) float32."""
    w1, b1, gamma, beta, run_mean, run_var, w2, b2 = (
        params["w1"], params["b1"], params["gamma"], params["beta"],
        params["run_mean"], params["run_var"], params["w2"], params["b2"])

    N, Cin, H, W = x_nchw.shape
    Cout = w2.shape[1]
    HW = H * W

    # ---- Fold BN (eval mode) + conv1 bias into a single matmul + shift ----
    eps = 1e-5
    bn_scale = gamma * lax.rsqrt(run_var + eps)              # (Cin,)
    # channel-major weight: h = w1t @ x, with w1t = (w1 * scale).T
    w1t = (w1 * bn_scale[None, :]).T                          # (Cin, Cin)
    shift = (b1 * bn_scale + (beta - run_mean * bn_scale)).reshape(Cin, 1)
    w2t = w2.T                                                # (Cout, Cin)
    b2c = b2.reshape(Cout, 1)

    # ---- NCHW stays put: (N, Cin, H, W) -> (N, Cin, HW) is a free reshape ----
    x_flat = x_nchw.reshape(N, Cin, HW)

    # bf16 matmul operands (halves HBM traffic for the activation stream).
    x_bf = x_flat.astype(jnp.bfloat16)
    w1t_bf = w1t.astype(jnp.bfloat16)
    w2t_bf = w2t.astype(jnp.bfloat16)

    # ---- Lane-dense pixel tiling ----
    if HW % 128 == 0:
        tile_p = min(tile_p, HW)
    else:
        tile_p = HW  # full-extent block is always legal for odd spatial sizes
    grid = (N, pl.cdiv(HW, tile_p))

    # Advisory cost estimate for XLA's scheduler.
    cost = pl.CostEstimate(
        flops=2 * N * HW * (Cin * Cin + Cin * Cout),
        transcendentals=N * HW,
        bytes_accessed=N * HW * (Cin * 2 + Cout * 4)
                       + 2 * (Cin * Cin + Cin * Cout) + 4 * (Cin + Cout),
    )

    # Explicit VMEM budget: double-buffered activation tiles + weight copies,
    # with headroom, clamped to be safe on v7x's 64 MiB VMEM.
    vmem_needed = (2 * tile_p * (Cin * 2 + Cout * 4)
                   + 2 * (Cin * Cin * 2 + Cin * Cout * 2 + (Cin + Cout) * 4))
    vmem_limit = int(min(max(4 * vmem_needed, 16 << 20), 48 << 20))

    out_flat = pl.pallas_call(
        _embed_head_kernel,
        out_shape=jax.ShapeDtypeStruct((N, Cout, HW), jnp.float32),
        grid_spec=pltpu.PrefetchScalarGridSpec(
            num_scalar_prefetch=0,
            grid=grid,
            in_specs=[
                pl.BlockSpec((None, Cin, tile_p), lambda n, p: (n, 0, p)),  # x
                pl.BlockSpec((Cin, Cin), lambda n, p: (0, 0)),    # w1' (folded)
                pl.BlockSpec((Cin, 1), lambda n, p: (0, 0)),      # shift
                pl.BlockSpec((Cout, Cin), lambda n, p: (0, 0)),   # w2'
                pl.BlockSpec((Cout, 1), lambda n, p: (0, 0)),     # b2
            ],
            out_specs=pl.BlockSpec((None, Cout, tile_p), lambda n, p: (n, 0, p)),
        ),
        compiler_params=pltpu.CompilerParams(
            dimension_semantics=("parallel", "parallel"),
            vmem_limit_bytes=vmem_limit),
        cost_estimate=cost,
    )(x_bf, w1t_bf, shift, w2t_bf, b2c)

    # (N, Cout, HW) -> (N, Cout, H, W) is a free reshape (still NCHW).
    return out_flat.reshape(N, Cout, H, W)


def init_params(key, dim_in, embed_dim):
    """Deterministic synthetic parameters matching the module's shapes.

    Conv2d(k=1) weight (out, in, 1, 1) is stored here as (in, out) so the
    per-pixel op is x @ W (the wrapper transposes for channel-major use).
    """
    k1, k2, k3, k4, k5, k6, k7, k8 = jax.random.split(key, 8)
    return {
        "w1": jax.random.normal(k1, (dim_in, dim_in), jnp.float32) * 0.1,
        "b1": jax.random.normal(k2, (dim_in,), jnp.float32) * 0.1,
        "gamma": 1.0 + 0.1 * jax.random.normal(k3, (dim_in,), jnp.float32),
        "beta": 0.1 * jax.random.normal(k4, (dim_in,), jnp.float32),
        "run_mean": 0.1 * jax.random.normal(k5, (dim_in,), jnp.float32),
        "run_var": 1.0 + 0.1 * jax.random.uniform(k6, (dim_in,), jnp.float32),
        "w2": jax.random.normal(k7, (dim_in, embed_dim), jnp.float32) * 0.1,
        "b2": jax.random.normal(k8, (embed_dim,), jnp.float32) * 0.1,
    }


def reference_forward(x_nchw, params):
    """Pure-JAX f32 reference mirroring the PyTorch module (eval-mode BN)."""
    eps = 1e-5
    h = jnp.einsum("nchw,cd->ndhw", x_nchw, params["w1"])
    h = h + params["b1"][None, :, None, None]
    scale = params["gamma"] / jnp.sqrt(params["run_var"] + eps)
    shift = params["beta"] - params["run_mean"] * scale
    h = h * scale[None, :, None, None] + shift[None, :, None, None]
    h = jnp.maximum(h, 0.0)
    y = jnp.einsum("nchw,cd->ndhw", h, params["w2"])
    y = y + params["b2"][None, :, None, None]
    norm = jnp.sqrt(jnp.sum(y * y, axis=1, keepdims=True))
    return y / jnp.maximum(norm, 1e-12)


if __name__ == "__main__":
    key = jax.random.PRNGKey(0)
    kx, kp = jax.random.split(key)

    N, dim_in, H, W = 2, 8, 16, 16
    embed_dim = 32

    x = jax.random.normal(kx, (N, dim_in, H, W), jnp.float32)
    params = init_params(kp, dim_in, embed_dim)

    out = embedding_head_forward(x, params)
    out = jax.block_until_ready(out)

    ref = reference_forward(x, params)
    assert out.shape == (N, embed_dim, H, W)
    # Tolerance relaxed vs the f32 version: matmul operands are bf16.
    assert jnp.allclose(out, ref, atol=2e-2, rtol=2e-2), "mismatch vs reference"

    print("KERNEL_OK")
</pallas_src>

<mosaic_0001>
module attributes {stable_mosaic.version = 11 : i64} {
  func.func @_embed_head_kernel(%arg0: i32, %arg1: i32, %arg2: memref<1x8x256xbf16, #tpu.memory_space<vmem>>, %arg3: memref<8x8xbf16, #tpu.memory_space<vmem>>, %arg4: memref<8x1xf32, #tpu.memory_space<vmem>>, %arg5: memref<32x8xbf16, #tpu.memory_space<vmem>>, %arg6: memref<32x1xf32, #tpu.memory_space<vmem>>, %arg7: memref<1x32x256xf32, #tpu.memory_space<vmem>>) attributes {dimension_semantics = [#tpu.dimension_semantics<parallel>, #tpu.dimension_semantics<parallel>], iteration_bounds = array<i64: 2, 1>, scalar_prefetch = 0 : i64, scratch_operands = 0 : i64, tpu.core_type = #tpu.core_type<tc>, window_params = [{transform_indices = @transform_0, window_bounds = array<i64: 1, 8, 256>}, {pipeline_mode = #tpu.pipeline_mode<synchronous>, transform_indices = @transform_1, window_bounds = array<i64: 8, 8>}, {pipeline_mode = #tpu.pipeline_mode<synchronous>, transform_indices = @transform_2, window_bounds = array<i64: 8, 1>}, {pipeline_mode = #tpu.pipeline_mode<synchronous>, transform_indices = @transform_3, window_bounds = array<i64: 32, 8>}, {pipeline_mode = #tpu.pipeline_mode<synchronous>, transform_indices = @transform_4, window_bounds = array<i64: 32, 1>}, {transform_indices = @transform_5, window_bounds = array<i64: 1, 32, 256>}]} {
    %c0 = arith.constant 0 : index
    %c0_0 = arith.constant 0 : index
    %c0_1 = arith.constant 0 : index
    %0 = vector.load %arg2[%c0, %c0_0, %c0_1] : memref<1x8x256xbf16, #tpu.memory_space<vmem>>, vector<1x8x256xbf16>
    %1 = vector.shape_cast %0 : vector<1x8x256xbf16> to vector<8x256xbf16>
    %c0_2 = arith.constant 0 : index
    %c0_3 = arith.constant 0 : index
    %2 = vector.load %arg3[%c0_2, %c0_3] : memref<8x8xbf16, #tpu.memory_space<vmem>>, vector<8x8xbf16>
    %cst = arith.constant dense<0.000000e+00> : vector<8x256xf32>
    %3 = tpu.matmul %2, %1, %cst {dimension_numbers = #tpu.dot_dimension_numbers<[1], [0], [0], [1], [0, 0, 1, 1], [], []>} : vector<8x8xbf16>, vector<8x256xbf16>, vector<8x256xf32> -> vector<8x256xf32>
    %c0_4 = arith.constant 0 : index
    %c0_5 = arith.constant 0 : index
    %4 = vector.load %arg4[%c0_4, %c0_5] : memref<8x1xf32, #tpu.memory_space<vmem>>, vector<8x1xf32>
    %5 = vector.broadcast %4 : vector<8x1xf32> to vector<8x256xf32>
    %6 = arith.addf %3, %5 : vector<8x256xf32>
    %cst_6 = arith.constant 0.000000e+00 : f32
    %7 = vector.broadcast %cst_6 : f32 to vector<8x256xf32>
    %8 = arith.maximumf %6, %7 : vector<8x256xf32>
    %c0_7 = arith.constant 0 : index
    %c0_8 = arith.constant 0 : index
    %9 = vector.load %arg5[%c0_7, %c0_8] : memref<32x8xbf16, #tpu.memory_space<vmem>>, vector<32x8xbf16>
    %10 = arith.truncf %8 : vector<8x256xf32> to vector<8x256xbf16>
    %cst_9 = arith.constant dense<0.000000e+00> : vector<32x256xf32>
    %11 = tpu.matmul %9, %10, %cst_9 {dimension_numbers = #tpu.dot_dimension_numbers<[1], [0], [0], [1], [0, 0, 1, 1], [], []>} : vector<32x8xbf16>, vector<8x256xbf16>, vector<32x256xf32> -> vector<32x256xf32>
    %c0_10 = arith.constant 0 : index
    %c0_11 = arith.constant 0 : index
    %12 = vector.load %arg6[%c0_10, %c0_11] : memref<32x1xf32, #tpu.memory_space<vmem>>, vector<32x1xf32>
    %13 = vector.broadcast %12 : vector<32x1xf32> to vector<32x256xf32>
    %14 = arith.addf %11, %13 : vector<32x256xf32>
    %15 = arith.mulf %14, %14 : vector<32x256xf32>
    %cst_12 = arith.constant dense<0.000000e+00> : vector<256xf32>
    %16 = vector.multi_reduction <add>, %15, %cst_12 [0] : vector<32x256xf32> to vector<256xf32>
    %17 = vector.shape_cast %16 : vector<256xf32> to vector<1x256xf32>
    %cst_13 = arith.constant 1.000000e-24 : f32
    %18 = vector.broadcast %cst_13 : f32 to vector<1x256xf32>
    %19 = arith.maximumf %17, %18 : vector<1x256xf32>
    %20 = math.rsqrt %19 : vector<1x256xf32>
    %21 = vector.broadcast %20 : vector<1x256xf32> to vector<32x256xf32>
    %22 = arith.mulf %14, %21 : vector<32x256xf32>
    %c0_14 = arith.constant 0 : index
    %c0_15 = arith.constant 0 : index
    %c0_16 = arith.constant 0 : index
    %23 = vector.load %arg7[%c0_14, %c0_15, %c0_16] : memref<1x32x256xf32, #tpu.memory_space<vmem>>, vector<1x32x256xf32>
    %24 = vector.shape_cast %23 : vector<1x32x256xf32> to vector<32x256xf32>
    %25 = vector.shape_cast %22 : vector<32x256xf32> to vector<1x32x256xf32>
    tpu.vector_store %arg7[%c0_14, %c0_15, %c0_16], %25 {strides = array<i32>} : memref<1x32x256xf32, #tpu.memory_space<vmem>>, vector<1x32x256xf32>,
    return
  }
  func.func @transform_0(%arg0: i32, %arg1: i32) -> (i32, i32, i32) {
    %c0_i32 = arith.constant 0 : i32
    %c0_i32_0 = arith.constant 0 : i32
    return %arg0, %c0_i32, %arg1 : i32, i32, i32
  }
  func.func @transform_1(%arg0: i32, %arg1: i32) -> (i32, i32) {
    %c0_i32 = arith.constant 0 : i32
    %c0_i32_0 = arith.constant 0 : i32
    %c0_i32_1 = arith.constant 0 : i32
    return %c0_i32, %c0_i32_0 : i32, i32
  }
  func.func @transform_2(%arg0: i32, %arg1: i32) -> (i32, i32) {
    %c0_i32 = arith.constant 0 : i32
    %c0_i32_0 = arith.constant 0 : i32
    %c0_i32_1 = arith.constant 0 : i32
    return %c0_i32, %c0_i32_0 : i32, i32
  }
  func.func @transform_3(%arg0: i32, %arg1: i32) -> (i32, i32) {
    %c0_i32 = arith.constant 0 : i32
    %c0_i32_0 = arith.constant 0 : i32
    %c0_i32_1 = arith.constant 0 : i32
    return %c0_i32, %c0_i32_0 : i32, i32
  }
  func.func @transform_4(%arg0: i32, %arg1: i32) -> (i32, i32) {
    %c0_i32 = arith.constant 0 : i32
    %c0_i32_0 = arith.constant 0 : i32
    %c0_i32_1 = arith.constant 0 : i32
    return %c0_i32, %c0_i32_0 : i32, i32
  }
  func.func @transform_5(%arg0: i32, %arg1: i32) -> (i32, i32, i32) {
    %c0_i32 = arith.constant 0 : i32
    %c0_i32_0 = arith.constant 0 : i32
    return %arg0, %c0_i32, %arg1 : i32, i32, i32
  }
}

</mosaic_0001>

<llo_original>
// kernel: embedding_head_forward.1
$region0: #{embedding_head_forward.1}
  #allocation0 [shape = 'u32[]', space=smem, size = 0x4, offset = 0x4, fixed_abs, tag = 'smem constant byte address 0x4 - core index']
  #allocation1 [shape = 'u32[144,128]{1,0:T(1,128)}', space=vmem, size = 0x12000, scoped, tag = 'internal scratch']
  %s0 = inlined_call_operand.vmem [shape: bf16[2,8,256], index: 0, kind: input, shape index: {}]
  %s1 = inlined_call_operand.vmem [shape: bf16[8,8], index: 1, kind: input, shape index: {}]
  %s2 = inlined_call_operand.vmem [shape: f32[8,1], index: 2, kind: input, shape index: {}]
  %s3 = inlined_call_operand.vmem [shape: bf16[32,8], index: 3, kind: input, shape index: {}]
  %s4 = inlined_call_operand.vmem [shape: f32[32,1], index: 4, kind: input, shape index: {}]
  %s5 = inlined_call_operand.vmem [shape: f32[2,32,256], index: 5, kind: output, shape index: {}]
  %s6 = sld [smem:[#allocation0]]
  $region53: #{embedding_head_forward.1} parent=0
    _
  %s8 = ssub.s32 1, %s6
  %s9 = scalar_select 0, %s8, %s6
  loop: start=0, step=1, limit=4
  $region2: #{embedding_head_forward.1} parent=0 // loop_pre_header
    _
  $region3: #{embedding_head_forward.1} parent=0 // loop_header
    %s11 = sphi 0, %s15
    %p12 = scmp.ge.s32.totalorder %s11, 4
    %s18 = sphi 0, %s30
    %s19 = sphi 0, %s26
    %s20 = sphi 0, %s18
    %s21 = sphi 0, %s19
    %s22 = sphi 0, %s20
    %s23 = sphi 0, %s21
    %s35 = sphi 0, %s37
    %s38 = sphi 0, %s35
    %s39 = sphi 0, %s38
    %s55 = sphi 0, %s39
    %s59 = sphi 0, %s59
    %s61 = sphi 0, %s59
    %s62 = sphi 0, %s61
    %s76 = sphi 0, %s62
    %s80 = sphi 0, %s80
    %s82 = sphi 0, %s80
    %s83 = sphi 0, %s82
    %s97 = sphi 0, %s83
    %s101 = sphi 0, %s101
    %s103 = sphi 0, %s101
    %s104 = sphi 0, %s103
    %s118 = sphi 0, %s104
    %s122 = sphi 0, %s122
    %s124 = sphi 0, %s122
    %s125 = sphi 0, %s124
    %s139 = sphi 0, %s125
    %s147 = sphi 0, %s149
    %s150 = sphi 0, %s147
    %s151 = sphi 0, %s150
    %s167 = sphi 0, %s151
  $region4: #{embedding_head_forward.1} parent=0 // loop_header_branch
    %14 = sbr.rel (%p12) target = $region8
  $region5: #{embedding_head_forward.1} parent=0 // loop_body
    %s16 = ssub.s32 %s11, 1
    %s17 = ssub.s32 %s11, 2
    %s24 = sadd.s32 1, %s19
    %p25 = scmp.ge.s32.totalorder %s24, 1
    %s26 = scalar_select %p25, 0, %s24
    %s27 = sadd.s32 1, %s18
    %s28 = scalar_select %p25, %s27, %s18
    %p29 = scmp.ge.s32.totalorder %s28, 2
    %s30 = scalar_select %p29, 0, %s28
    %s31 = ssub.s32 %s18, %s30
    %s32 = ssub.s32 %s19, %s26
    %s33 = sor.u32 %s31, %s32
    %p34 = scmp.eq.s32.totalorder %s33, 0
    %s36 = sadd.s32 %s35, 1
    %s37 = scalar_select %p34, %s35, %s36
    %p40 = pneg %p34
    %p41 = scmp.eq.s32.totalorder %s11, 1
    %p42 = por %p40, %p41
    %p43 = scmp.ne.s32.totalorder %s35, %s38
    %p44 = scmp.eq.s32.totalorder %s11, 0
    %p45 = por %p43, %p44
    %p46 = scmp.ne.s32.totalorder %s35, %s38
    %p47 = scmp.eq.s32.totalorder %s16, 1
    %p48 = por %p46, %p47
    %p49 = scmp.ne.s32.totalorder %s38, %s39
    %p50 = scmp.eq.s32.totalorder %s16, 0
    %p51 = por %p49, %p50
    %p52 = scmp.ne.s32.totalorder %s38, %s39
    %p53 = scmp.eq.s32.totalorder %s17, 1
    %p54 = por %p52, %p53
    %p56 = scmp.ne.s32.totalorder %s39, %s55
    %p57 = scmp.eq.s32.totalorder %s17, 0
    %p58 = por %p56, %p57
    %s60 = sadd.s32 %s59, 1
    %p63 = scmp.eq.s32.totalorder %s11, 1
    %p64 = scmp.ne.s32.totalorder %s59, %s61
    %p65 = scmp.eq.s32.totalorder %s11, 0
    %p66 = por %p64, %p65
    %p67 = scmp.ne.s32.totalorder %s59, %s61
    %p68 = scmp.eq.s32.totalorder %s16, 1
    %p69 = por %p67, %p68
    %p70 = scmp.ne.s32.totalorder %s61, %s62
    %p71 = scmp.eq.s32.totalorder %s16, 0
    %p72 = por %p70, %p71
    %p73 = scmp.ne.s32.totalorder %s61, %s62
    %p74 = scmp.eq.s32.totalorder %s17, 1
    %p75 = por %p73, %p74
    %p77 = scmp.ne.s32.totalorder %s62, %s76
    %p78 = scmp.eq.s32.totalorder %s17, 0
    %p79 = por %p77, %p78
    %s81 = sadd.s32 %s80, 1
    %p84 = scmp.eq.s32.totalorder %s11, 1
    %p85 = scmp.ne.s32.totalorder %s80, %s82
    %p86 = scmp.eq.s32.totalorder %s11, 0
    %p87 = por %p85, %p86
    %p88 = scmp.ne.s32.totalorder %s80, %s82
    %p89 = scmp.eq.s32.totalorder %s16, 1
    %p90 = por %p88, %p89
    %p91 = scmp.ne.s32.totalorder %s82, %s83
    %p92 = scmp.eq.s32.totalorder %s16, 0
    %p93 = por %p91, %p92
    %p94 = scmp.ne.s32.totalorder %s82, %s83
    %p95 = scmp.eq.s32.totalorder %s17, 1
    %p96 = por %p94, %p95
    %p98 = scmp.ne.s32.totalorder %s83, %s97
    %p99 = scmp.eq.s32.totalorder %s17, 0
    %p100 = por %p98, %p99
    %s102 = sadd.s32 %s101, 1
    %p105 = scmp.eq.s32.totalorder %s11, 1
    %p106 = scmp.ne.s32.totalorder %s101, %s103
    %p107 = scmp.eq.s32.totalorder %s11, 0
    %p108 = por %p106, %p107
    %p109 = scmp.ne.s32.totalorder %s101, %s103
    %p110 = scmp.eq.s32.totalorder %s16, 1
    %p111 = por %p109, %p110
    %p112 = scmp.ne.s32.totalorder %s103, %s104
    %p113 = scmp.eq.s32.totalorder %s16, 0
    %p114 = por %p112, %p113
    %p115 = scmp.ne.s32.totalorder %s103, %s104
    %p116 = scmp.eq.s32.totalorder %s17, 1
    %p117 = por %p115, %p116
    %p119 = scmp.ne.s32.totalorder %s104, %s118
    %p120 = scmp.eq.s32.totalorder %s17, 0
    %p121 = por %p119, %p120
    %s123 = sadd.s32 %s122, 1
    %p126 = scmp.eq.s32.totalorder %s11, 1
    %p127 = scmp.ne.s32.totalorder %s122, %s124
    %p128 = scmp.eq.s32.totalorder %s11, 0
    %p129 = por %p127, %p128
    %p130 = scmp.ne.s32.totalorder %s122, %s124
    %p131 = scmp.eq.s32.totalorder %s16, 1
    %p132 = por %p130, %p131
    %p133 = scmp.ne.s32.totalorder %s124, %s125
    %p134 = scmp.eq.s32.totalorder %s16, 0
    %p135 = por %p133, %p134
    %p136 = scmp.ne.s32.totalorder %s124, %s125
    %p137 = scmp.eq.s32.totalorder %s17, 1
    %p138 = por %p136, %p137
    %p140 = scmp.ne.s32.totalorder %s125, %s139
    %p141 = scmp.eq.s32.totalorder %s17, 0
    %p142 = por %p140, %p141
    %s143 = ssub.s32 %s18, %s30
    %s144 = ssub.s32 %s19, %s26
    %s145 = sor.u32 %s143, %s144
    %p146 = scmp.eq.s32.totalorder %s145, 0
    %s148 = sadd.s32 %s147, 1
    %s149 = scalar_select %p146, %s147, %s148
    %p152 = pneg %p146
    %p153 = scmp.eq.s32.totalorder %s11, 1
    %p154 = por %p152, %p153
    %p155 = scmp.ne.s32.totalorder %s147, %s150
    %p156 = scmp.eq.s32.totalorder %s11, 0
    %p157 = por %p155, %p156
    %p158 = scmp.ne.s32.totalorder %s147, %s150
    %p159 = scmp.eq.s32.totalorder %s16, 1
    %p160 = por %p158, %p159
    %p161 = scmp.ne.s32.totalorder %s150, %s151
    %p162 = scmp.eq.s32.totalorder %s16, 0
    %p163 = por %p161, %p162
    %p164 = scmp.ne.s32.totalorder %s150, %s151
    %p165 = scmp.eq.s32.totalorder %s17, 1
    %p166 = por %p164, %p165
    %p168 = scmp.ne.s32.totalorder %s151, %s167
    %p169 = scmp.eq.s32.totalorder %s17, 0
    %p170 = por %p168, %p169
    %p171 = scmp.le.s32.totalorder 1, %s11
    %p172 = scmp.lt.s32.totalorder %s11, 3
    %p173 = pnand %p171, %p172
    %p174 = pneg %p173
    // Predicated region
    $region9: #{embedding_head_forward.1} parent=5 // pred_check
      _
    $region10: #{embedding_head_forward.1} parent=5 // pred_check_branch
      %176 = sbr.rel (%p173) target = $region12
    $region11: #{embedding_head_forward.1} parent=5 // pred_region
      %s177 = ssub.s32 %s11, 1
      // Predicated region
      $region13: #{embedding_head_forward.1} parent=11 // pred_check
        %p178 = pneg %p72
      $region14: #{embedding_head_forward.1} parent=11 // pred_check_branch
        %180 = sbr.rel (%p178) target = $region16
      $region15: #{embedding_head_forward.1} parent=11 // pred_region
        _
      $region16: #{embedding_head_forward.1} parent=11 // pred_fallthru
        _
      // Predicated region
      $region17: #{embedding_head_forward.1} parent=11 // pred_check
        %p181 = pneg %p93
      $region18: #{embedding_head_forward.1} parent=11 // pred_check_branch
        %183 = sbr.rel (%p181) target = $region20
      $region19: #{embedding_head_forward.1} parent=11 // pred_region
        _
      $region20: #{embedding_head_forward.1} parent=11 // pred_fallthru
        _
      // Predicated region
      $region21: #{embedding_head_forward.1} parent=11 // pred_check
        %p184 = pneg %p114
      $region22: #{embedding_head_forward.1} parent=11 // pred_check_branch
        %186 = sbr.rel (%p184) target = $region24
      $region23: #{embedding_head_forward.1} parent=11 // pred_region
        _
      $region24: #{embedding_head_forward.1} parent=11 // pred_fallthru
        _
      // Predicated region
      $region25: #{embedding_head_forward.1} parent=11 // pred_check
        %p187 = pneg %p135
      $region26: #{embedding_head_forward.1} parent=11 // pred_check_branch
        %189 = sbr.rel (%p187) target = $region28
      $region27: #{embedding_head_forward.1} parent=11 // pred_region
        _
      $region28: #{embedding_head_forward.1} parent=11 // pred_fallthru
        _
    $region12: #{embedding_head_forward.1} parent=5 // pred_fallthru
      _
    %p190 = scmp.lt.s32.totalorder %s11, 2
    // Predicated region
    $region29: #{embedding_head_forward.1} parent=5 // pred_check
      %p191 = pneg %p190
    $region30: #{embedding_head_forward.1} parent=5 // pred_check_branch
      %193 = sbr.rel (%p191) target = $region32
    $region31: #{embedding_head_forward.1} parent=5 // pred_region
      // Predicated region
      $region33: #{embedding_head_forward.1} parent=31 // pred_check
        %p194 = pneg %p45
      $region34: #{embedding_head_forward.1} parent=31 // pred_check_branch
        %196 = sbr.rel (%p194) target = $region36
      $region35: #{embedding_head_forward.1} parent=31 // pred_region
        %s197 = smul.u32 2, %s19
        %p198 = scmp.lt.s32.totalorder %s18, 1
        %s199 = scalar_select %p198, %s18, 1
        %p200 = scmp.lt.s32.totalorder %s197, 1
        %s201 = scalar_select %p200, %s197, 1
        %s202 = smul.addr %s199, 2
        %s203 = sadd.s32 %s201, %s202
        %s204 = smul.addr %s203, 4
        %s205 = scalar_lea.vmem %s0, %s204
        %s206 = smul.u32 2, %s19
      $region36: #{embedding_head_forward.1} parent=31 // pred_fallthru
        _
    $region32: #{embedding_head_forward.1} parent=5 // pred_fallthru
      _
    %p207 = scmp.le.s32.totalorder 1, %s11
    %p208 = scmp.lt.s32.totalorder %s11, 3
    %p209 = pnand %p207, %p208
    %p210 = pneg %p209
    // Predicated region
    $region37: #{embedding_head_forward.1} parent=5 // pred_check
      _
    $region38: #{embedding_head_forward.1} parent=5 // pred_check_branch
      %212 = sbr.rel (%p209) target = $region40
    $region39: #{embedding_head_forward.1} parent=5 // pred_region
      %s213 = ssub.s32 %s11, 1
      %s214 = smul.u32 2, %s21
      %p215 = scmp.lt.s32.totalorder %s20, 1
      %s216 = scalar_select %p215, %s20, 1
      %p217 = scmp.lt.s32.totalorder %s214, 1
      %s218 = scalar_select %p217, %s214, 1
      %s219 = smul.addr %s216, 2
      %s220 = sadd.s32 %s218, %s219
      %s221 = smul.addr %s220, 4
      %s222 = scalar_lea.vmem %s0, %s221
      %p223 = pneg %p51
      %p224 = pneg %p48
      %p225 = pneg %p72
      %p226 = pneg %p69
      %p227 = pneg %p93
      %p228 = pneg %p90
      %p229 = pneg %p114
      %p230 = pneg %p111
      %p231 = pneg %p135
      %p232 = pneg %p132
      %p233 = pneg %p163
      %p234 = pneg %p160
      %s235 = smul.u32 2, %s21
      %p236 = scmp.lt.s32.totalorder %s20, 1
      %s237 = scalar_select %p236, %s20, 1
      %p238 = scmp.lt.s32.totalorder %s235, 1
      %s239 = scalar_select %p238, %s235, 1
      %s240 = smul.addr %s237, 8
      %s241 = sadd.s32 %s239, %s240
      %s242 = smul.addr %s241, 8
      %s243 = scalar_lea.vmem %s5, %s242
      %s244 = smul.u32 2, %s21
      %p245 = scmp.lt.s32.totalorder %s20, 1
      %s246 = scalar_select %p245, %s20, 1
      %p247 = scmp.lt.s32.totalorder %s244, 1
      %s248 = scalar_select %p247, %s244, 1
      %s249 = smul.addr %s246, 2
      %s250 = sadd.s32 %s248, %s249
      %s251 = smul.addr %s250, 4
      %s252 = scalar_lea.vmem %s0, %s251
      %s253 = smul.u32 2, %s21
      %s254 = smul.u32 2, %s21
      %p255 = scmp.lt.s32.totalorder %s20, 1
      %s256 = scalar_select %p255, %s20, 1
      %p257 = scmp.lt.s32.totalorder %s254, 1
      %s258 = scalar_select %p257, %s254, 1
      %s259 = smul.addr %s256, 8
      %s260 = sadd.s32 %s258, %s259
      %s261 = smul.addr %s260, 8
      %s262 = scalar_lea.vmem %s5, %s261
      %s263 = smul.u32 2, %s21
      %v265 = vld [vmem:[%s252] sm:$0xff]
      %v266 = vld [vmem:[%s1] sm:$0xf]
      %v267 = vld [vmem:[%s2] sm:$0xff]
      %269 = vset.pattern.permute.xlu0 0
      %270 = vperm.xlu0 %269, %v267
      %v271 = vpop.permute.xlu0 %270
      %v274 = vunpack.c.l.b16 %v265
      %v275 = vunpack.c.h.b16 %v265
      %v276 = vpack.c.b16 %v274, %v274
      %v277 = vpack.c.b16 %v275, %v275
      %vm278 = vcmask 64512
      %v280 = vsel %vm278, %v266, 0
      %vm282 = vcmask 1043456
      %v284 = vsel %vm282, %v276, 0
      %v287 = vsel %vm282, %v277, 0
      %289 = vmatprep.subr.bf16.mxu0 %v287
      %290 = vmatpush1.bf16.msra.mxu0 %v284
      %291 = vmatprep.subr.bf16.mxu0 0
      %292 = vmatpush1.bf16.msra.mxu0 0
      %293 = vmatprep.subr.bf16.mxu0 0
      %294 = vmatpush1.bf16.msra.mxu0 0
      %295 = vmatprep.subr.bf16.mxu0 0
      %296 = vmatpush1.bf16.msra.mxu0 0
      %297 = vmatprep.subr.bf16.mxu0 0
      %298 = vmatpush1.bf16.msra.mxu0 0
      %299 = vmatprep.subr.bf16.mxu0 0
      %300 = vmatpush1.bf16.msra.mxu0 0
      %301 = vmatprep.subr.bf16.mxu0 0
      %302 = vmatpush1.bf16.msra.mxu0 0
      %303 = vmatprep.subr.bf16.mxu0 0
      %304 = vmatpush1.bf16.msra.mxu0 0
      %305 = vmatprep.subr.bf16.mxu0 0
      %306 = vmatpush1.bf16.msra.mxu0 0
      %307 = vmatprep.subr.bf16.mxu0 0
      %308 = vmatpush1.bf16.msra.mxu0 0
      %309 = vmatprep.subr.bf16.mxu0 0
      %310 = vmatpush1.bf16.msra.mxu0 0
      %311 = vmatprep.subr.bf16.mxu0 0
      %312 = vmatpush1.bf16.msra.mxu0 0
      %313 = vmatprep.subr.bf16.mxu0 0
      %314 = vmatpush1.bf16.msra.mxu0 0
      %315 = vmatprep.subr.bf16.mxu0 0
      %316 = vmatpush1.bf16.msra.mxu0 0
      %317 = vmatprep.subr.bf16.mxu0 0
      %318 = vmatpush1.bf16.msra.mxu0 0
      %319 = vmatprep.subr.bf16.mxu0 0
      %320 = vmatpush1.bf16.msra.mxu0 0
      %321 = vmatprep.mubr.bf16.mxu0 0
      %322 = vmatmul.mubr.bf16.gmra.mrb[0].mxu0 %v280
      %v323 = vpop.f32.mrb[0].mxu0
      %v324 = vadd.f32 %v271, %v323
      %v325 = vpop.f32.mrb[0].mxu0
      %v326 = vadd.f32 %v271, %v325
      %v327 = vpop.f32.mrb[0].mxu0
      %v328 = vpop.f32.mrb[0].mxu0
      %329 = vdwg.mxu0
      %v330 = vmax.f32 %v324, 0.0
      %v331 = vmax.f32 %v326, 0.0
      %v332 = vld [vmem:[%s3] sm:$0xf]
      %v333 = vld [vmem:[%s3 + $0x4] sm:$0xf]
      %v334 = vld [vmem:[%s3 + $0x8] sm:$0xf]
      %v335 = vld [vmem:[%s3 + $0xc] sm:$0xf]
      %v336 = vpack.c.bf16 %v330, %v330
      %v337 = vpack.c.bf16 %v331, %v331
      %v338 = vld [vmem:[%s4] sm:$0xff]
      %v339 = vld [vmem:[%s4 + $0x8] sm:$0xff]
      %v340 = vld [vmem:[%s4 + $0x10] sm:$0xff]
      %v341 = vld [vmem:[%s4 + $0x18] sm:$0xff]
      %343 = vset.pattern.permute.xlu0 0
      %344 = vperm.xlu0 %343, %v338
      %v345 = vpop.permute.xlu0 %344
      %348 = vset.pattern.permute.xlu0 0
      %349 = vperm.xlu0 %348, %v339
      %v350 = vpop.permute.xlu0 %349
      %353 = vset.pattern.permute.xlu0 0
      %354 = vperm.xlu0 %353, %v340
      %v355 = vpop.permute.xlu0 %354
      %358 = vset.pattern.permute.xlu0 0
      %359 = vperm.xlu0 %358, %v341
      %v360 = vpop.permute.xlu0 %359
      %v366 = vunpack.c.l.b16 %v332
      %v367 = vunpack.c.l.b16 %v333
      %v368 = vunpack.c.l.b16 %v334
      %v369 = vunpack.c.l.b16 %v335
      %v370 = vpack.c.b16 %v367, %v366
      %v371 = vpack.c.b16 %v369, %v368
      %v373 = vsel %vm278, %v370, 0
      %v376 = vsel %vm278, %v371, 0
      %v379 = vsel %vm282, %v336, 0
      %v382 = vsel %vm282, %v337, 0
      %384 = vmatprep.subr.bf16.mxu0 %v382
      %385 = vmatpush1.bf16.msra.mxu0 %v379
      %386 = vmatprep.subr.bf16.mxu0 0
      %387 = vmatpush1.bf16.msra.mxu0 0
      %388 = vmatprep.subr.bf16.mxu0 0
      %389 = vmatpush1.bf16.msra.mxu0 0
      %390 = vmatprep.subr.bf16.mxu0 0
      %391 = vmatpush1.bf16.msra.mxu0 0
      %392 = vmatprep.subr.bf16.mxu0 0
      %393 = vmatpush1.bf16.msra.mxu0 0
      %394 = vmatprep.subr.bf16.mxu0 0
      %395 = vmatpush1.bf16.msra.mxu0 0
      %396 = vmatprep.subr.bf16.mxu0 0
      %397 = vmatpush1.bf16.msra.mxu0 0
      %398 = vmatprep.subr.bf16.mxu0 0
      %399 = vmatpush1.bf16.msra.mxu0 0
      %400 = vmatprep.subr.bf16.mxu0 0
      %401 = vmatpush1.bf16.msra.mxu0 0
      %402 = vmatprep.subr.bf16.mxu0 0
      %403 = vmatpush1.bf16.msra.mxu0 0
      %404 = vmatprep.subr.bf16.mxu0 0
      %405 = vmatpush1.bf16.msra.mxu0 0
      %406 = vmatprep.subr.bf16.mxu0 0
      %407 = vmatpush1.bf16.msra.mxu0 0
      %408 = vmatprep.subr.bf16.mxu0 0
      %409 = vmatpush1.bf16.msra.mxu0 0
      %410 = vmatprep.subr.bf16.mxu0 0
      %411 = vmatpush1.bf16.msra.mxu0 0
      %412 = vmatprep.subr.bf16.mxu0 0
      %413 = vmatpush1.bf16.msra.mxu0 0
      %414 = vmatprep.subr.bf16.mxu0 0
      %415 = vmatpush1.bf16.msra.mxu0 0
      %416 = vmatprep.mubr.bf16.mxu0 0
      %417 = vmatmul.mubr.bf16.gmra.mrb[0].mxu0 %v373
      %v418 = vpop.f32.mrb[0].mxu0
      %v419 = vadd.f32 %v345, %v418
      %v420 = vpop.f32.mrb[0].mxu0
      %v421 = vadd.f32 %v345, %v420
      %v422 = vpop.f32.mrb[0].mxu0
      %v423 = vadd.f32 %v350, %v422
      %v424 = vpop.f32.mrb[0].mxu0
      %v425 = vadd.f32 %v350, %v424
      %426 = vmatprep.mubr.bf16.mxu0 0
      %427 = vmatmul.mubr.bf16.gmra.mrb[0].mxu0 %v376
      %v428 = vpop.f32.mrb[0].mxu0
      %v429 = vadd.f32 %v355, %v428
      %v430 = vpop.f32.mrb[0].mxu0
      %v431 = vadd.f32 %v355, %v430
      %v432 = vpop.f32.mrb[0].mxu0
      %v433 = vadd.f32 %v360, %v432
      %v434 = vpop.f32.mrb[0].mxu0
      %v435 = vadd.f32 %v360, %v434
      %436 = vdwg.mxu0
      %v437 = vmul.f32 %v419, %v419
      %v438 = vmul.f32 %v421, %v421
      %v439 = vmul.f32 %v423, %v423
      %v440 = vmul.f32 %v425, %v425
      %v441 = vmul.f32 %v429, %v429
      %v442 = vmul.f32 %v431, %v431
      %v443 = vmul.f32 %v433, %v433
      %v444 = vmul.f32 %v435, %v435
      %v445 = vadd.f32 %v437, %v439
      %v446 = vadd.f32 %v445, %v441
      %v447 = vadd.f32 %v446, %v443
      %v448 = vrot.slane %v447, 4
      %v449 = vadd.f32 %v447, %v448
      %v450 = vrot.slane %v449, 2
      %v451 = vadd.f32 %v449, %v450
      %v452 = vrot.slane %v451, 1
      %v453 = vadd.f32 %v451, %v452
      %v454 = vadd.f32 %v438, %v440
      %v455 = vadd.f32 %v454, %v442
      %v456 = vadd.f32 %v455, %v444
      %v457 = vrot.slane %v456, 4
      %v458 = vadd.f32 %v456, %v457
      %v459 = vrot.slane %v458, 2
      %v460 = vadd.f32 %v458, %v459
      %v461 = vrot.slane %v460, 1
      %v462 = vadd.f32 %v460, %v461
      %v463 = vmax.f32 %v453, 1e-24
      %v464 = vmax.f32 %v462, 1e-24
      %v465 = vrsqrt.pop %v463
      %v466 = vrsqrt.pop %v464
      %v467 = vmul.f32 %v419, %v465
      %v468 = vmul.f32 %v421, %v466
      %v469 = vmul.f32 %v423, %v465
      %v470 = vmul.f32 %v425, %v466
      %v471 = vmul.f32 %v429, %v465
      %v472 = vmul.f32 %v431, %v466
      %v473 = vmul.f32 %v433, %v465
      %v474 = vmul.f32 %v435, %v466
      %475 = vst [vmem:[%s262] sm:$0xff] %v467
      %476 = vst [vmem:[%s262 + $0x8] sm:$0xff] %v468
      %477 = vst [vmem:[%s262 + $0x10] sm:$0xff] %v469
      %478 = vst [vmem:[%s262 + $0x18] sm:$0xff] %v470
      %479 = vst [vmem:[%s262 + $0x20] sm:$0xff] %v471
      %480 = vst [vmem:[%s262 + $0x28] sm:$0xff] %v472
      %481 = vst [vmem:[%s262 + $0x30] sm:$0xff] %v473
      %482 = vst [vmem:[%s262 + $0x38] sm:$0xff] %v474
      %s483 = smul.u32 2, %s21
      %p484 = scmp.lt.s32.totalorder %s20, 1
      %s485 = scalar_select %p484, %s20, 1
      %p486 = scmp.lt.s32.totalorder %s483, 1
      %s487 = scalar_select %p486, %s483, 1
      %s488 = smul.addr %s485, 8
      %s489 = sadd.s32 %s487, %s488
      %s490 = smul.addr %s489, 8
      %s491 = scalar_lea.vmem %s5, %s490
      // Predicated region
      $region41: #{embedding_head_forward.1} parent=39 // pred_check
        %p492 = pneg %p160
      $region42: #{embedding_head_forward.1} parent=39 // pred_check_branch
        %494 = sbr.rel (%p492) target = $region44
      $region43: #{embedding_head_forward.1} parent=39 // pred_region
        %s495 = smul.u32 2, %s21
      $region44: #{embedding_head_forward.1} parent=39 // pred_fallthru
        _
    $region40: #{embedding_head_forward.1} parent=5 // pred_fallthru
      _
    %p496 = scmp.le.s32.totalorder 2, %s11
    // Predicated region
    $region45: #{embedding_head_forward.1} parent=5 // pred_check
      %p497 = pneg %p496
    $region46: #{embedding_head_forward.1} parent=5 // pred_check_branch
      %499 = sbr.rel (%p497) target = $region48
    $region47: #{embedding_head_forward.1} parent=5 // pred_region
      %s500 = ssub.s32 %s11, 2
      // Predicated region
      $region49: #{embedding_head_forward.1} parent=47 // pred_check
        %p501 = pneg %p166
      $region50: #{embedding_head_forward.1} parent=47 // pred_check_branch
        %503 = sbr.rel (%p501) target = $region52
      $region51: #{embedding_head_forward.1} parent=47 // pred_region
        %s504 = smul.u32 2, %s23
        %p505 = scmp.lt.s32.totalorder %s22, 1
        %s506 = scalar_select %p505, %s22, 1
        %p507 = scmp.lt.s32.totalorder %s504, 1
        %s508 = scalar_select %p507, %s504, 1
        %s509 = smul.addr %s506, 8
        %s510 = sadd.s32 %s508, %s509
        %s511 = smul.addr %s510, 8
        %s512 = scalar_lea.vmem %s5, %s511
      $region52: #{embedding_head_forward.1} parent=47 // pred_fallthru
        _
    $region48: #{embedding_head_forward.1} parent=5 // pred_fallthru
      _
  $region6: #{embedding_head_forward.1} parent=0 // loop_footer
    %s15 = sadd.s32 1, %s11
  $region7: #{embedding_head_forward.1} parent=0 // loop_footer_branch
    %10 = sbr.rel target = $region3
  $region8: #{embedding_head_forward.1} parent=0 // loop_exit
    _

</llo_original>
